<compile_context>
chip_gen: v7x
topology: tpu7x:2x2x1
jax: 0.10.0
libtpu: 0.0.40
codegen_flags: <defaults>
</compile_context>

<pallas_src>
import jax
import jax.numpy as jnp
from jax.experimental import pallas as pl
from jax.experimental.pallas import tpu as pltpu


def _vd_kernel(m_ref, x_ref, o_ref):
    # keep -> x * 1/(1-p), drop -> 0; mask broadcasts over the time dimension.
    o_ref[...] = x_ref[...] * m_ref[...]


def _vmem_capacity_bytes():
    try:
        info = pltpu.get_tpu_info()
        cap = getattr(info, "vmem_capacity_bytes", None)
        if cap:
            return int(cap)
    except Exception:
        pass
    return 64 * 1024 * 1024          # conservative (v7x-sized) fallback


def _hw_block_and_limit():
    """Generation-aware (per-block byte target, vmem_limit_bytes)."""
    vmem_phys = _vmem_capacity_bytes()
    if vmem_phys > 96 * 1024 * 1024:     # v5e / v6e: 128 MiB physical VMEM
        return 12 * 1024 * 1024, 64 * 1024 * 1024
    # v7x-class: 64 MiB physical VMEM, 3.2 TB/s HBM.  4 double-buffered
    # blocks (in+out) + mask must stay well under the physical limit.
    return 10 * 1024 * 1024, 48 * 1024 * 1024


def _sublane(dtype):
    # second-minor tile granularity: 8 (32-bit), 16 (bf16/f16), 32 (int8/fp8)
    return max(8, (8 * 4) // jnp.dtype(dtype).itemsize)


def _round_down(x, m):
    return (x // m) * m


def _pick_rows(T, row_bytes, target_bytes, sublane):
    """Rows per block along a second-minor dim: the full dim, or a multiple of
    `sublane` sized to ~target_bytes, used with a cdiv grid (Pallas handles the
    ragged last block)."""
    budget_rows = max(1, target_bytes // max(row_bytes, 1))
    if T <= budget_rows:
        return T                      # whole dim in one block (always legal)
    rows = _round_down(budget_rows, sublane)
    if rows < sublane:
        rows = sublane                # smallest legal tile; correctness first
    return min(rows, T)


def _compiler_params(vmem_limit):
    return pltpu.CompilerParams(
        dimension_semantics=("parallel", "parallel"),
        vmem_limit_bytes=vmem_limit,
    )


def _vd_batch_first(x, mask, block_bytes, vmem_limit):
    B, T, H = x.shape
    dtype = x.dtype
    itemsize = jnp.dtype(dtype).itemsize
    sub = _sublane(dtype)
    slab_bytes = T * H * itemsize          # one full (T, H) batch slab

    if slab_bytes >= block_bytes:
        bb = 1                              # tile time inside one batch row
        tt = _pick_rows(T, H * itemsize, block_bytes, sub)
    else:
        tt = T                              # whole time dim; tile over batch
        bb_budget = max(1, block_bytes // slab_bytes)
        # keep bb a divisor of B (leading dim): blocks stay contiguous slabs
        bb = max(d for d in range(1, B + 1) if B % d == 0 and d <= bb_budget)

    n = B * T * H
    cost = pl.CostEstimate(flops=n, transcendentals=0,
                           bytes_accessed=2 * n * itemsize + B * H * itemsize)
    return pl.pallas_call(
        _vd_kernel,
        out_shape=jax.ShapeDtypeStruct((B, T, H), dtype),
        grid=(pl.cdiv(B, bb), pl.cdiv(T, tt)),      # time innermost -> mask reused
        in_specs=[pl.BlockSpec((bb, 1, H), lambda b, t: (b, 0, 0)),
                  pl.BlockSpec((bb, tt, H), lambda b, t: (b, t, 0))],
        out_specs=pl.BlockSpec((bb, tt, H), lambda b, t: (b, t, 0)),
        compiler_params=_compiler_params(vmem_limit),
        cost_estimate=cost,
    )(mask, x)


def _vd_time_major(x, mask2d, block_bytes, vmem_limit):
    T, B, H = x.shape
    BH = B * H
    dtype = x.dtype
    itemsize = jnp.dtype(dtype).itemsize
    sub = _sublane(dtype)
    x2 = x.reshape(T, BH)                   # lane-dense, contiguous (free)
    row_bytes = BH * itemsize

    if sub * row_bytes <= block_bytes:
        tc = BH                             # full minor dim
        tt = _pick_rows(T, row_bytes, block_bytes, sub)
    else:
        # enormous B*H: also tile the minor dim in 128-lane multiples so
        # stores stay unmasked (except the ragged edge block).
        tc = max(128, _round_down(block_bytes // (sub * itemsize), 128))
        tt = sub

    n = T * BH
    cost = pl.CostEstimate(flops=n, transcendentals=0,
                           bytes_accessed=2 * n * itemsize + BH * itemsize)
    out = pl.pallas_call(
        _vd_kernel,
        out_shape=jax.ShapeDtypeStruct((T, BH), dtype),
        grid=(pl.cdiv(BH, tc), pl.cdiv(T, tt)),     # time innermost -> mask reused
        in_specs=[pl.BlockSpec((1, tc), lambda c, t: (0, c)),
                  pl.BlockSpec((tt, tc), lambda c, t: (t, c))],
        out_specs=pl.BlockSpec((tt, tc), lambda c, t: (t, c)),
        compiler_params=_compiler_params(vmem_limit),
        cost_estimate=cost,
    )(mask2d, x2)
    return out.reshape(T, B, H)


def variational_dropout(x, *, dropout, key, batch_first=False, training=True,
                        block_bytes=None):
    """Pallas implementation of VariationalDropout.forward (dense tensors)."""
    if not training or dropout <= 0.0:
        return x

    keep_prob = 1.0 - dropout
    scale = 1.0 / keep_prob
    dtype = x.dtype
    auto_block, vmem_limit = _hw_block_and_limit()
    if block_bytes is None:
        block_bytes = auto_block

    if batch_first:
        B, T, H = x.shape
        keep = jax.random.bernoulli(key, p=keep_prob, shape=(B, 1, H))
        # mask carries 1/(1-p) in x.dtype (matches torch's in-dtype divide).
        mask = jnp.where(keep, jnp.asarray(scale, dtype), jnp.asarray(0, dtype))
        return _vd_batch_first(x, mask, block_bytes, vmem_limit)

    T, B, H = x.shape
    keep = jax.random.bernoulli(key, p=keep_prob, shape=(1, B * H))
    mask = jnp.where(keep, jnp.asarray(scale, dtype), jnp.asarray(0, dtype))
    return _vd_time_major(x, mask, block_bytes, vmem_limit)


if __name__ == "__main__":
    key = jax.random.PRNGKey(0)
    kx, km, km2 = jax.random.split(key, 3)
    p = 0.5
    scale = 1.0 / (1.0 - p)

    # --- time-major input (batch_first=False), like LSTM inputs/outputs ---
    T, B, H = 20, 8, 32                      # B*H = 256 (lane-dense); T % 8 != 0
    x = jax.random.normal(kx, (T, B, H), dtype=jnp.float32)
    y = jax.block_until_ready(
        variational_dropout(x, dropout=p, key=km, batch_first=False, training=True))
    keep = y != 0.0
    assert bool(jnp.all(keep == keep[0:1]))                       # mask shared over time
    assert bool(jnp.all(jnp.where(keep, jnp.abs(y - x * scale), 0.0) < 1e-5))
    assert bool(jnp.all(
        variational_dropout(x, dropout=p, key=km, training=False) == x))  # eval = id

    # forced tiny block -> multi-step cdiv grid with a ragged last time block
    y2 = jax.block_until_ready(
        variational_dropout(x, dropout=p, key=km, batch_first=False, training=True,
                            block_bytes=8 * 256 * 4))
    assert bool(jnp.all(y2 == y))            # same key/mask -> identical output

    # --- batch_first=True path ((B, T, H) tiled directly, no transposes) ---
    xb = jnp.transpose(x, (1, 0, 2))
    yb = jax.block_until_ready(
        variational_dropout(xb, dropout=p, key=km2, batch_first=True, training=True))
    keep_b = yb != 0.0
    assert bool(jnp.all(keep_b == keep_b[:, 0:1]))
    assert bool(jnp.all(jnp.where(keep_b, jnp.abs(yb - xb * scale), 0.0) < 1e-5))

    # forced small blocks: (a) batch-tiled 2-D grid, (b) time-tiled ragged grid
    yb2 = jax.block_until_ready(
        variational_dropout(xb, dropout=p, key=km2, batch_first=True, training=True,
                            block_bytes=2 * T * H * 4))
    yb3 = jax.block_until_ready(
        variational_dropout(xb, dropout=p, key=km2, batch_first=True, training=True,
                            block_bytes=8 * H * 4))
    assert bool(jnp.all(yb2 == yb)) and bool(jnp.all(yb3 == yb))

    print("KERNEL_OK")
</pallas_src>

<mosaic_0001>
module attributes {stable_mosaic.version = 11 : i64} {
  func.func @_vd_kernel(%arg0: i32, %arg1: i32, %arg2: memref<1x256xf32, #tpu.memory_space<vmem>>, %arg3: memref<20x256xf32, #tpu.memory_space<vmem>>, %arg4: memref<20x256xf32, #tpu.memory_space<vmem>>) attributes {dimension_semantics = [#tpu.dimension_semantics<parallel>, #tpu.dimension_semantics<parallel>], iteration_bounds = array<i64: 1, 1>, scalar_prefetch = 0 : i64, scratch_operands = 0 : i64, tpu.core_type = #tpu.core_type<tc>, window_params = [{transform_indices = @transform_0, window_bounds = array<i64: 1, 256>}, {transform_indices = @transform_1, window_bounds = array<i64: 20, 256>}, {transform_indices = @transform_2, window_bounds = array<i64: 20, 256>}]} {
    %c0 = arith.constant 0 : index
    %c0_0 = arith.constant 0 : index
    %0 = vector.load %arg3[%c0, %c0_0] : memref<20x256xf32, #tpu.memory_space<vmem>>, vector<20x256xf32>
    %c0_1 = arith.constant 0 : index
    %c0_2 = arith.constant 0 : index
    %1 = vector.load %arg2[%c0_1, %c0_2] : memref<1x256xf32, #tpu.memory_space<vmem>>, vector<1x256xf32>
    %2 = vector.broadcast %1 : vector<1x256xf32> to vector<20x256xf32>
    %3 = arith.mulf %0, %2 : vector<20x256xf32>
    %c0_3 = arith.constant 0 : index
    %c0_4 = arith.constant 0 : index
    %4 = vector.load %arg4[%c0_3, %c0_4] : memref<20x256xf32, #tpu.memory_space<vmem>>, vector<20x256xf32>
    tpu.vector_store %arg4[%c0_3, %c0_4], %3 {strides = array<i32>} : memref<20x256xf32, #tpu.memory_space<vmem>>, vector<20x256xf32>,
    return
  }
  func.func @transform_0(%arg0: i32, %arg1: i32) -> (i32, i32) {
    %c0_i32 = arith.constant 0 : i32
    %c0_i32_0 = arith.constant 0 : i32
    return %c0_i32, %arg0 : i32, i32
  }
  func.func @transform_1(%arg0: i32, %arg1: i32) -> (i32, i32) {
    %c0_i32 = arith.constant 0 : i32
    return %arg1, %arg0 : i32, i32
  }
  func.func @transform_2(%arg0: i32, %arg1: i32) -> (i32, i32) {
    %c0_i32 = arith.constant 0 : i32
    return %arg1, %arg0 : i32, i32
  }
}

</mosaic_0001>

<llo_original>
// kernel: tpu_custom_call.1
$region0: #{tpu_custom_call.1}
  #allocation0 [shape = 'u32[]', space=smem, size = 0x4, offset = 0x4, fixed_abs, tag = 'smem constant byte address 0x4 - core index']
  #allocation1 [shape = 'u32[144,128]{1,0:T(1,128)}', space=vmem, size = 0x12000, scoped, tag = 'internal scratch']
  %s0 = inlined_call_operand.hbm [shape: f32[1,256], index: 0, kind: input, shape index: {}]
  %s1 = inlined_call_operand.hbm [shape: f32[20,256], index: 1, kind: input, shape index: {}]
  %s2 = inlined_call_operand.hbm [shape: f32[20,256], index: 2, kind: output, shape index: {}]
  %s3 = sld [smem:[#allocation0]]
  $region26: #{tpu_custom_call.1} parent=0
    _
  %s5 = ssub.s32 1, %s3
  %s6 = scalar_select 0, %s5, %s3
  $region1: #{tpu_custom_call.1} parent=0
    #allocation2 [shape = 'u8[1024]{0}', space=vmem, size = 0x400, scoped, tag = 'input window, operand 0, single buffered']
    #allocation3 [shape = 's32[1]{0}', space=sflag, size = 0x4, scoped, tag = 'scoped memory for tpu_custom_call.1']
    #allocation4 [shape = 's32[1]{0}', space=sflag, size = 0x4, scoped, tag = 'scoped memory for tpu_custom_call.1']
    #allocation5 [shape = 'u8[24576]{0}', space=vmem, size = 0x6000, scoped, tag = 'input window, operand 1, single buffered']
    #allocation6 [shape = 's32[1]{0}', space=sflag, size = 0x4, scoped, tag = 'scoped memory for tpu_custom_call.1']
    #allocation7 [shape = 'u8[24576]{0}', space=vmem, size = 0x6000, scoped, tag = 'output window, operand 0, single buffered']
    %7 = vsyncpa [#allocation3], 0
    %8 = vsyncpa [#allocation6], 0
    %9 = vsyncpa [#allocation4], 0
    // Predicated region
    $region2: #{tpu_custom_call.1} parent=1 // pred_check
      _
    $region3: #{tpu_custom_call.1} parent=1 // pred_check_branch
      %11 = sbr.rel (0) target = $region5
    $region4: #{tpu_custom_call.1} parent=1 // pred_region
      %s13 = ssub.s32 32, 32
      %14 = vsyncadd [#allocation3], %s13
      %s16 = sshll.u32 [#allocation2], 4
      %s17 = int_to_ptr.vmem [resolvable:$true] %s16
      %19 = dma.hbm_to_vmem [thread:$0]  %s0, 32, %s17, [#allocation3]
    $region5: #{tpu_custom_call.1} parent=1 // pred_fallthru
      _
    // Predicated region
    $region6: #{tpu_custom_call.1} parent=1 // pred_check
      _
    $region7: #{tpu_custom_call.1} parent=1 // pred_check_branch
      %21 = sbr.rel (0) target = $region9
    $region8: #{tpu_custom_call.1} parent=1 // pred_region
      %s23 = ssub.s32 768, 768
      %24 = vsyncadd [#allocation6], %s23
      %s25 = sshll.u32 [#allocation5], 4
      %s26 = int_to_ptr.vmem [resolvable:$true] %s25
      %31 = dma.hbm_to_vmem [thread:$0]  %s1, 768, %s26, [#allocation6], 256, 256, 16
    $region9: #{tpu_custom_call.1} parent=1 // pred_fallthru
      _
    // Predicated region
    $region10: #{tpu_custom_call.1} parent=1 // pred_check
      _
    $region11: #{tpu_custom_call.1} parent=1 // pred_check_branch
      %33 = sbr.rel (0) target = $region13
    $region12: #{tpu_custom_call.1} parent=1 // pred_region
      %34 = dma.done [#allocation3], 32
    $region13: #{tpu_custom_call.1} parent=1 // pred_fallthru
      _
    // Predicated region
    $region14: #{tpu_custom_call.1} parent=1 // pred_check
      _
    $region15: #{tpu_custom_call.1} parent=1 // pred_check_branch
      %36 = sbr.rel (0) target = $region17
    $region16: #{tpu_custom_call.1} parent=1 // pred_region
      %37 = dma.done [#allocation6], 768
    $region17: #{tpu_custom_call.1} parent=1 // pred_fallthru
      _
    %v38 = vld [vmem:[#allocation5] sm:$0xff]
    %v39 = vld [vmem:[#allocation5 + $0x8] sm:$0xff]
    %v40 = vld [vmem:[#allocation5 + $0x10] sm:$0xff]
    %v41 = vld [vmem:[#allocation5 + $0x18] sm:$0xff]
    %v42 = vld [vmem:[#allocation5 + $0x20] sm:$0xf]
    %v43 = vld [vmem:[#allocation5 + $0x28] sm:$0xf]
    %v44 = vld [vmem:[#allocation2] sm:$0x3]
    %v46 = vlaneseq
    %v47 = vshrl.u32 %v46, 7
    %v48 = vsub.s32 0, %v47
    %v49 = vrot.slane %v44, %v48
    %v50 = vlaneseq
    %v51 = vshrl.u32 %v50, 7
    %v52 = vsub.s32 1, %v51
    %v53 = vrot.slane %v44, %v52
    %v56 = vmul.f32 %v38, %v49
    %v57 = vmul.f32 %v39, %v53
    %v58 = vmul.f32 %v40, %v49
    %v59 = vmul.f32 %v41, %v53
    %v60 = vmul.f32 %v42, %v49
    %v61 = vmul.f32 %v43, %v53
    %62 = vst [vmem:[#allocation7] sm:$0xff] %v56
    %63 = vst [vmem:[#allocation7 + $0x8] sm:$0xff] %v57
    %64 = vst [vmem:[#allocation7 + $0x10] sm:$0xff] %v58
    %65 = vst [vmem:[#allocation7 + $0x18] sm:$0xff] %v59
    %66 = vst [vmem:[#allocation7 + $0x20] sm:$0xf] %v60
    %67 = vst [vmem:[#allocation7 + $0x28] sm:$0xf] %v61
    // Predicated region
    $region18: #{tpu_custom_call.1} parent=1 // pred_check
      _
    $region19: #{tpu_custom_call.1} parent=1 // pred_check_branch
      %69 = sbr.rel (0) target = $region21
    $region20: #{tpu_custom_call.1} parent=1 // pred_region
      %s71 = ssub.s32 768, 768
      %72 = vsyncadd [#allocation4], %s71
      %s73 = sshll.u32 [#allocation7], 4
      %s74 = int_to_ptr.vmem [resolvable:$true] %s73
      %79 = dma.vmem_to_hbm [thread:$0]  %s74, 768, %s2, [#allocation4], 256, 256, 16
    $region21: #{tpu_custom_call.1} parent=1 // pred_fallthru
      _
    // Predicated region
    $region22: #{tpu_custom_call.1} parent=1 // pred_check
      _
    $region23: #{tpu_custom_call.1} parent=1 // pred_check_branch
      %81 = sbr.rel (0) target = $region25
    $region24: #{tpu_custom_call.1} parent=1 // pred_region
      %82 = dma.done [#allocation4], 768
    $region25: #{tpu_custom_call.1} parent=1 // pred_fallthru
      _
    %83 = vsyncpa [#allocation3], 1
    %84 = vsyncpa [#allocation6], 1
    %85 = vsyncpa [#allocation4], 1

</llo_original>
